<compile_context>
chip_gen: v5e
topology: v5e:2x2
jax: 0.10.0
libtpu: 0.0.40
codegen_flags: <defaults>
</compile_context>

<pallas_src>
import math

import jax
import jax.numpy as jnp
from jax import lax
from jax.experimental import pallas as pl
from jax.experimental.pallas import tpu as pltpu

EPS = 1e-12                              # torch.nn.functional.normalize default eps
_TILE_BUDGET_BYTES = 24 * 1024 * 1024    # double-buffered blocks + resident scratch
_VMEM_LIMIT_BYTES = 48 * 1024 * 1024     # explicit scoped-VMEM request (< 64 MiB v7x)


def _x_normalize_kernel(x_ref, o_ref):
    # x_ref: (S, D) block of one batch element.  F.normalize(xx, dim=1): L2 norm over
    # the S axis for every (b, d).
    x = x_ref[...].astype(jnp.float32)
    ss = jnp.sum(x * x, axis=0, keepdims=True)               # (1, D)
    o_ref[...] = (x * lax.rsqrt(jnp.maximum(ss, EPS * EPS))).astype(o_ref.dtype)


def _cosine_head_kernel(sigma_ref, xn_ref, w_ref, o_ref, wn_ref):
    # sigma_ref: (1,) f32 in SMEM.
    # xn_ref   : (t_m, D) pre-normalized activations (compute_dtype).
    # w_ref    : (t_o, D) RAW weight rows for the current O tile (resident across m).
    # o_ref    : (t_m, t_o) lane-dense output tile.
    # wn_ref   : (t_o, D) VMEM scratch: normalized + sigma-scaled weights.
    @pl.when(pl.program_id(1) == 0)
    def _():
        # Normalize each weight row over in_features and fold sigma in, ONCE per O
        # tile; the result stays resident for the whole inner M loop.
        w = w_ref[...].astype(jnp.float32)
        ss = jnp.sum(w * w, axis=1, keepdims=True)            # (t_o, 1)
        inv = lax.rsqrt(jnp.maximum(ss, EPS * EPS))           # == 1 / max(||w||, eps)
        wn_ref[...] = (w * (sigma_ref[0] * inv)).astype(wn_ref.dtype)

    # (t_m, D) . (t_o, D)^T on the MXU: contraction dim is the lane dim of both
    # operands (flash-attention q.k^T pattern) -> no materialized transpose.
    out = lax.dot_general(
        xn_ref[...].astype(wn_ref.dtype), wn_ref[...],
        dimension_numbers=(((1,), (1,)), ((), ())),
        preferred_element_type=jnp.float32)                   # (t_m, t_o)
    o_ref[...] = out.astype(o_ref.dtype)


def _pick_tiles(m, d, o, x_bytes, w_bytes, out_bytes, wn_bytes):
    """VMEM-budget-aware (t_m, t_o): 2x double-buffered x/w/out blocks + resident scratch."""
    t_m = m if m <= 512 else 512                              # fold batch into MXU M dim

    def need(t_m_, t_o_):
        return (2 * (t_m_ * d * x_bytes + t_o_ * d * w_bytes + t_m_ * t_o_ * out_bytes)
                + t_o_ * d * wn_bytes)

    if o <= 512:
        t_o = o                                               # one full lane-dense tile
    else:
        t_o = 128                                             # 128-multiples only
        for cand in (512, 384, 256):
            if need(t_m, cand) <= _TILE_BUDGET_BYTES:
                t_o = cand
                break
    # If still over budget (very large D), shrink t_m (stays a multiple of 8).
    while t_m > 128 and t_m != m and need(t_m, t_o) > _TILE_BUDGET_BYTES:
        t_m //= 2
    return t_m, t_o


def _cosine_head(x_n2, w, sigma, out_dtype, compute_dtype):
    m, d = x_n2.shape
    o = w.shape[0]
    cd_bytes = jnp.dtype(compute_dtype).itemsize
    t_m, t_o = _pick_tiles(m, d, o,
                           x_bytes=cd_bytes,
                           w_bytes=jnp.dtype(w.dtype).itemsize,
                           out_bytes=jnp.dtype(out_dtype).itemsize,
                           wn_bytes=cd_bytes)
    n_o = pl.cdiv(o, t_o)
    n_m = pl.cdiv(m, t_m)
    return pl.pallas_call(
        _cosine_head_kernel,
        out_shape=jax.ShapeDtypeStruct((m, o), out_dtype),
        grid_spec=pltpu.PrefetchScalarGridSpec(
            num_scalar_prefetch=0,
            grid=(n_o, n_m),                   # O tiles outer -> weight tile resident
            in_specs=[
                pl.BlockSpec(memory_space=pltpu.SMEM),               # sigma (1,)
                pl.BlockSpec((t_m, d), lambda oi, mi: (mi, 0)),      # x_n
                pl.BlockSpec((t_o, d), lambda oi, mi: (oi, 0)),      # raw weight rows
            ],
            out_specs=pl.BlockSpec((t_m, t_o), lambda oi, mi: (mi, oi)),
            scratch_shapes=[pltpu.VMEM((t_o, d), compute_dtype)],    # normalized weights
        ),
        compiler_params=pltpu.CompilerParams(
            dimension_semantics=("parallel", "arbitrary"),
            vmem_limit_bytes=_VMEM_LIMIT_BYTES,
        ),
    )(sigma, x_n2, w)


def split_cosine_linear(xx, w1, w2, sigma, *, compute_dtype=jnp.bfloat16):
    """xx: (B, S, D); w1: (O1, D); w2: (O2, D); sigma: (1,).  Returns (B, S, O1 + O2)."""
    B, S, D = xx.shape
    out_dtype = xx.dtype
    sigma = jnp.asarray(sigma, jnp.float32).reshape((1,))

    # 1) Normalize xx over the S axis ONCE (f32 math, compute_dtype storage).
    x_n = pl.pallas_call(
        _x_normalize_kernel,
        out_shape=jax.ShapeDtypeStruct((B, S, D), compute_dtype),
        grid_spec=pltpu.PrefetchScalarGridSpec(
            num_scalar_prefetch=0,
            grid=(B,),
            in_specs=[pl.BlockSpec((pl.Squeezed(), S, D), lambda b: (b, 0, 0))],
            out_specs=pl.BlockSpec((pl.Squeezed(), S, D), lambda b: (b, 0, 0)),
        ),
        compiler_params=pltpu.CompilerParams(
            dimension_semantics=("parallel",),
            vmem_limit_bytes=_VMEM_LIMIT_BYTES,
        ),
    )(xx)

    # Fold batch into the matmul M dimension (contiguous reshape, no data movement).
    x_n2 = x_n.reshape(B * S, D)

    # 2) One pure-matmul call per head (raw weights read directly; no concat/.T pass).
    out1 = _cosine_head(x_n2, w1, sigma, out_dtype, compute_dtype)
    out2 = _cosine_head(x_n2, w2, sigma, out_dtype, compute_dtype)

    # 3) The module's torch.cat((out1, out2), dim=2).
    out = jnp.concatenate([out1, out2], axis=-1)
    return out.reshape(B, S, w1.shape[0] + w2.shape[0])


def _reference(xx, w1, w2, sigma):
    # Plain-JAX mirror of the PyTorch forward (num_head=1).
    def cosine(x, w):
        x_n = x / jnp.maximum(jnp.linalg.norm(x, axis=1, keepdims=True), EPS)  # dim=1 -> S
        w_n = w / jnp.maximum(jnp.linalg.norm(w, axis=1, keepdims=True), EPS)
        return jnp.einsum("bsd,od->bso", x_n, w_n)

    return sigma[0] * jnp.concatenate([cosine(xx, w1), cosine(xx, w2)], axis=2)


if __name__ == "__main__":
    B, S, D = 2, 8, 32
    O1, O2 = 16, 16

    key = jax.random.PRNGKey(0)
    kx, kw1, kw2 = jax.random.split(key, 3)

    xx = jax.random.normal(kx, (B, S, D), dtype=jnp.float32)

    # PyTorch init: uniform(-stdv, stdv), stdv = 1/sqrt(in_features); sigma = 1.0
    stdv = 1.0 / math.sqrt(D)
    w1 = jax.random.uniform(kw1, (O1, D), dtype=jnp.float32, minval=-stdv, maxval=stdv)
    w2 = jax.random.uniform(kw2, (O2, D), dtype=jnp.float32, minval=-stdv, maxval=stdv)
    sigma = jnp.ones((1,), dtype=jnp.float32)

    out = jax.block_until_ready(split_cosine_linear(xx, w1, w2, sigma))

    ref = _reference(xx, w1, w2, sigma)
    assert out.shape == (B, S, O1 + O2)
    err = float(jnp.max(jnp.abs(out.astype(jnp.float32) - ref)))
    # bf16 MXU operands with f32 accumulation; norm math in f32.
    assert err < 2e-2, err

    print("KERNEL_OK")
</pallas_src>

<mosaic_0001>
module attributes {stable_mosaic.version = 11 : i64} {
  func.func @_x_normalize_kernel(%arg0: i32, %arg1: memref<1x8x32xf32, #tpu.memory_space<vmem>>, %arg2: memref<1x8x32xbf16, #tpu.memory_space<vmem>>) attributes {dimension_semantics = [#tpu.dimension_semantics<parallel>], iteration_bounds = array<i64: 2>, scalar_prefetch = 0 : i64, scratch_operands = 0 : i64, tpu.core_type = #tpu.core_type<tc>, window_params = [{transform_indices = @transform_0, window_bounds = array<i64: 1, 8, 32>}, {transform_indices = @transform_1, window_bounds = array<i64: 1, 8, 32>}]} {
    %c0 = arith.constant 0 : index
    %c0_0 = arith.constant 0 : index
    %c0_1 = arith.constant 0 : index
    %0 = vector.load %arg1[%c0, %c0_0, %c0_1] : memref<1x8x32xf32, #tpu.memory_space<vmem>>, vector<1x8x32xf32>
    %1 = vector.shape_cast %0 : vector<1x8x32xf32> to vector<8x32xf32>
    %2 = arith.mulf %1, %1 : vector<8x32xf32>
    %cst = arith.constant dense<0.000000e+00> : vector<32xf32>
    %3 = vector.multi_reduction <add>, %2, %cst [0] : vector<8x32xf32> to vector<32xf32>
    %4 = vector.shape_cast %3 : vector<32xf32> to vector<1x32xf32>
    %cst_2 = arith.constant 1.000000e-24 : f32
    %5 = vector.broadcast %cst_2 : f32 to vector<1x32xf32>
    %6 = arith.maximumf %4, %5 : vector<1x32xf32>
    %7 = math.rsqrt %6 : vector<1x32xf32>
    %8 = vector.broadcast %7 : vector<1x32xf32> to vector<8x32xf32>
    %9 = arith.mulf %1, %8 : vector<8x32xf32>
    %10 = arith.truncf %9 : vector<8x32xf32> to vector<8x32xbf16>
    %c0_3 = arith.constant 0 : index
    %c0_4 = arith.constant 0 : index
    %c0_5 = arith.constant 0 : index
    %11 = vector.load %arg2[%c0_3, %c0_4, %c0_5] : memref<1x8x32xbf16, #tpu.memory_space<vmem>>, vector<1x8x32xbf16>
    %12 = vector.shape_cast %11 : vector<1x8x32xbf16> to vector<8x32xbf16>
    %13 = vector.shape_cast %10 : vector<8x32xbf16> to vector<1x8x32xbf16>
    tpu.vector_store %arg2[%c0_3, %c0_4, %c0_5], %13 {strides = array<i32>} : memref<1x8x32xbf16, #tpu.memory_space<vmem>>, vector<1x8x32xbf16>,
    return
  }
  func.func @transform_0(%arg0: i32) -> (i32, i32, i32) {
    %c0_i32 = arith.constant 0 : i32
    %c0_i32_0 = arith.constant 0 : i32
    %c0_i32_1 = arith.constant 0 : i32
    return %arg0, %c0_i32, %c0_i32_0 : i32, i32, i32
  }
  func.func @transform_1(%arg0: i32) -> (i32, i32, i32) {
    %c0_i32 = arith.constant 0 : i32
    %c0_i32_0 = arith.constant 0 : i32
    %c0_i32_1 = arith.constant 0 : i32
    return %arg0, %c0_i32, %c0_i32_0 : i32, i32, i32
  }
}

</mosaic_0001>

<llo_original>
// kernel: tpu_custom_call.1
$region0: #{tpu_custom_call.1}
  #allocation0 [shape = 'u32[]', space=smem, size = 0x4, offset = 0x4, fixed_abs, tag = 'smem constant byte address 0x4 - core index']
  #allocation1 [shape = 'u32[72,128]{1,0:T(1,128)}', space=vmem, size = 0x9000, scoped, tag = 'internal scratch']
  %s0 = inlined_call_operand.hbm [shape: f32[2,8,32], index: 0, kind: input, shape index: {}]
  %s1 = inlined_call_operand.hbm [shape: bf16[2,8,32], index: 1, kind: output, shape index: {}]
  %s2 = sld [smem:[#allocation0]]
  $region41: #{tpu_custom_call.1} parent=0
    _
  %s4 = ssub.s32 1, %s2
  %s5 = scalar_select 0, %s4, %s2
  $region1: #{tpu_custom_call.1} parent=0
    #allocation2 [shape = 'u8[8192]{0}', space=vmem, size = 0x2000, scoped, tag = 'input window, operand 0']
    #allocation3 [shape = 's32[2]{0}', space=sflag, size = 0x8, scoped, tag = 'scoped memory for tpu_custom_call.1']
    #allocation4 [shape = 's32[2]{0}', space=sflag, size = 0x8, scoped, tag = 'scoped memory for tpu_custom_call.1']
    #allocation5 [shape = 'u8[4096]{0}', space=vmem, size = 0x1000, scoped, tag = 'output window, operand 0']
    %6 = vsyncpa [#allocation3], 0
    %s7 = scalar_lea.sflag [#allocation3], 1
    %8 = vsyncpa %s7, 0
    %9 = vsyncpa [#allocation4], 0
    %s10 = scalar_lea.sflag [#allocation4], 1
    %11 = vsyncpa %s10, 0
    loop: start=0, step=1, limit=4
    $region2: #{tpu_custom_call.1} parent=1 // loop_pre_header
      _
    $region3: #{tpu_custom_call.1} parent=1 // loop_header
      %s13 = sphi 0, %s17
      %p14 = scmp.ge.s32.totalorder %s13, 4
      %s23 = sphi 0, %s25
      %s26 = sphi 0, %s23
      %s27 = sphi 0, %s26
      %s43 = sphi 0, %s27
      %s49 = sphi 0, %s51
      %s52 = sphi 0, %s49
      %s53 = sphi 0, %s52
      %s69 = sphi 0, %s53
    $region4: #{tpu_custom_call.1} parent=1 // loop_header_branch
      %16 = sbr.rel (%p14) target = $region8
    $region5: #{tpu_custom_call.1} parent=1 // loop_body
      %s18 = ssub.s32 %s13, 1
      %s19 = ssub.s32 %s13, 2
      %s20 = sadd.s32 %s13, 1
      %s21 = ssub.s32 %s13, %s20
      %p22 = scmp.eq.s32.totalorder %s21, 0
      %s24 = sadd.s32 %s23, 1
      %s25 = scalar_select %p22, %s23, %s24
      %p28 = pneg %p22
      %p29 = scmp.eq.s32.totalorder %s13, 1
      %p30 = por %p28, %p29
      %p31 = scmp.ne.s32.totalorder %s23, %s26
      %p32 = scmp.eq.s32.totalorder %s13, 0
      %p33 = por %p31, %p32
      %p34 = scmp.ne.s32.totalorder %s23, %s26
      %p35 = scmp.eq.s32.totalorder %s18, 1
      %p36 = por %p34, %p35
      %p37 = scmp.ne.s32.totalorder %s26, %s27
      %p38 = scmp.eq.s32.totalorder %s18, 0
      %p39 = por %p37, %p38
      %p40 = scmp.ne.s32.totalorder %s26, %s27
      %p41 = scmp.eq.s32.totalorder %s19, 1
      %p42 = por %p40, %p41
      %p44 = scmp.ne.s32.totalorder %s27, %s43
      %p45 = scmp.eq.s32.totalorder %s19, 0
      %p46 = por %p44, %p45
      %s47 = ssub.s32 %s13, %s20
      %p48 = scmp.eq.s32.totalorder %s47, 0
      %s50 = sadd.s32 %s49, 1
      %s51 = scalar_select %p48, %s49, %s50
      %p54 = pneg %p48
      %p55 = scmp.eq.s32.totalorder %s13, 1
      %p56 = por %p54, %p55
      %p57 = scmp.ne.s32.totalorder %s49, %s52
      %p58 = scmp.eq.s32.totalorder %s13, 0
      %p59 = por %p57, %p58
      %p60 = scmp.ne.s32.totalorder %s49, %s52
      %p61 = scmp.eq.s32.totalorder %s18, 1
      %p62 = por %p60, %p61
      %p63 = scmp.ne.s32.totalorder %s52, %s53
      %p64 = scmp.eq.s32.totalorder %s18, 0
      %p65 = por %p63, %p64
      %p66 = scmp.ne.s32.totalorder %s52, %s53
      %p67 = scmp.eq.s32.totalorder %s19, 1
      %p68 = por %p66, %p67
      %p70 = scmp.ne.s32.totalorder %s53, %s69
      %p71 = scmp.eq.s32.totalorder %s19, 0
      %p72 = por %p70, %p71
      %p73 = scmp.le.s32.totalorder 1, %s13
      %p74 = scmp.lt.s32.totalorder %s13, 3
      %p75 = pnand %p73, %p74
      %p76 = pneg %p75
      // Predicated region
      $region9: #{tpu_custom_call.1} parent=5 // pred_check
        _
      $region10: #{tpu_custom_call.1} parent=5 // pred_check_branch
        %78 = sbr.rel (%p75) target = $region12
      $region11: #{tpu_custom_call.1} parent=5 // pred_region
        %s79 = ssub.s32 %s13, 1
      $region12: #{tpu_custom_call.1} parent=5 // pred_fallthru
        _
      %p80 = scmp.lt.s32.totalorder %s13, 2
      // Predicated region
      $region13: #{tpu_custom_call.1} parent=5 // pred_check
        %p81 = pneg %p80
      $region14: #{tpu_custom_call.1} parent=5 // pred_check_branch
        %83 = sbr.rel (%p81) target = $region16
      $region15: #{tpu_custom_call.1} parent=5 // pred_region
        // Predicated region
        $region17: #{tpu_custom_call.1} parent=15 // pred_check
          %p84 = pneg %p33
        $region18: #{tpu_custom_call.1} parent=15 // pred_check_branch
          %86 = sbr.rel (%p84) target = $region20
        $region19: #{tpu_custom_call.1} parent=15 // pred_region
          %s87 = sand.u32 %s23, 1
          %s88 = scalar_lea.sflag [#allocation3], %s87
          %s89 = sand.u32 %s23, 1
          %s90 = smul.addr %s89, 8
          %s91 = scalar_lea.vmem [#allocation2], %s90
          %93 = vsyncadd %s88, 0
          %s94 = smul.addr %s13, 8
          %s95 = scalar_lea.hbm %s0, %s94
          %s97 = sshll.u32 %s95, 4
          %s98 = int_to_ptr.hbm [resolvable:$true] %s97
          %s99 = sshll.u32 %s91, 4
          %s100 = int_to_ptr.vmem [resolvable:$true] %s99
          %102 = dma.hbm_to_vmem [thread:$0]  %s98, 128, %s100, %s88
        $region20: #{tpu_custom_call.1} parent=15 // pred_fallthru
          _
      $region16: #{tpu_custom_call.1} parent=5 // pred_fallthru
        _
      %p103 = scmp.le.s32.totalorder 1, %s13
      %p104 = scmp.lt.s32.totalorder %s13, 3
      %p105 = pnand %p103, %p104
      %p106 = pneg %p105
      // Predicated region
      $region21: #{tpu_custom_call.1} parent=5 // pred_check
        _
      $region22: #{tpu_custom_call.1} parent=5 // pred_check_branch
        %108 = sbr.rel (%p105) target = $region24
      $region23: #{tpu_custom_call.1} parent=5 // pred_region
        %s109 = ssub.s32 %s13, 1
        %s110 = sand.u32 %s26, 1
        %s111 = scalar_lea.sflag [#allocation3], %s110
        %s112 = sand.u32 %s26, 1
        %s113 = smul.addr %s112, 8
        %s114 = scalar_lea.vmem [#allocation2], %s113
        // Predicated region
        $region25: #{tpu_custom_call.1} parent=23 // pred_check
          %p115 = pneg %p39
        $region26: #{tpu_custom_call.1} parent=23 // pred_check_branch
          %117 = sbr.rel (%p115) target = $region28
        $region27: #{tpu_custom_call.1} parent=23 // pred_region
          %119 = dma.done %s111, 128
        $region28: #{tpu_custom_call.1} parent=23 // pred_fallthru
          _
        %s120 = sand.u32 %s26, 1
        %s121 = scalar_lea.sflag [#allocation3], %s120
        %s122 = sand.u32 %s26, 1
        %s123 = smul.addr %s122, 8
        %s124 = scalar_lea.vmem [#allocation2], %s123
        %p125 = pneg %p39
        %p126 = pneg %p36
        %p127 = pneg %p65
        %p128 = pneg %p62
        %s129 = sand.u32 %s52, 1
        %s130 = scalar_lea.sflag [#allocation4], %s129
        %s131 = sand.u32 %s52, 1
        %s132 = smul.addr %s131, 4
        %s133 = scalar_lea.vmem [#allocation5], %s132
        %v134 = vld [vmem:[%s114] sm:$0xff]
        %v135 = vmul.f32 %v134, %v134
        %vm136 = vcmask 261120
        %v137 = vsel %vm136, %v135, 0.0
        %v138 = vrot.slane %v137, 4
        %v139 = vadd.f32 %v137, %v138
        %v140 = vrot.slane %v139, 2
        %v141 = vadd.f32 %v139, %v140
        %v142 = vrot.slane %v141, 1
        %v143 = vadd.f32 %v141, %v142
        %v144 = vmax.f32 %v143, 1e-24
        %v145 = vrsqrt.pop %v144
        %v146 = vmul.f32 %v145, %v144
        %v147 = vmul.f32 %v146, %v145
        %v148 = vmul.f32 0.5, %v147
        %v149 = vsub.f32 1.5, %v148
        %v150 = vmul.f32 %v145, %v149
        %vm151 = vweird.f32 %v144
        %vm152 = vweird.f32 %v145
        %vm153 = vmor %vm151, %vm152
        %v154 = vsel %vm153, %v145, %v150
        %v155 = vmul.f32 %v134, %v154
        %v156 = vpack.c.bf16 %v155, %v155
        %vm157 = vcmask 257024
        %158 = vst.msk [vmem:[%s133] sm:$0xf] %vm157, %v156
        %s159 = sand.u32 %s52, 1
        %s160 = scalar_lea.sflag [#allocation4], %s159
        %s161 = sand.u32 %s52, 1
        %s162 = smul.addr %s161, 4
        %s163 = scalar_lea.vmem [#allocation5], %s162
        // Predicated region
        $region29: #{tpu_custom_call.1} parent=23 // pred_check
          %p164 = pneg %p62
        $region30: #{tpu_custom_call.1} parent=23 // pred_check_branch
          %166 = sbr.rel (%p164) target = $region32
        $region31: #{tpu_custom_call.1} parent=23 // pred_region
          %168 = vsyncadd %s160, 0
          %s169 = smul.addr %s18, 4
          %s170 = scalar_lea.hbm %s1, %s169
          %s172 = sshll.u32 %s163, 4
          %s173 = int_to_ptr.vmem [resolvable:$true] %s172
          %s174 = sshll.u32 %s170, 4
          %s175 = int_to_ptr.hbm [resolvable:$true] %s174
          %177 = dma.vmem_to_hbm [thread:$0]  %s173, 64, %s175, %s160
        $region32: #{tpu_custom_call.1} parent=23 // pred_fallthru
          _
      $region24: #{tpu_custom_call.1} parent=5 // pred_fallthru
        _
      %p178 = scmp.le.s32.totalorder 2, %s13
      // Predicated region
      $region33: #{tpu_custom_call.1} parent=5 // pred_check
        %p179 = pneg %p178
      $region34: #{tpu_custom_call.1} parent=5 // pred_check_branch
        %181 = sbr.rel (%p179) target = $region36
      $region35: #{tpu_custom_call.1} parent=5 // pred_region
        %s182 = ssub.s32 %s13, 2
        // Predicated region
        $region37: #{tpu_custom_call.1} parent=35 // pred_check
          %p183 = pneg %p68
        $region38: #{tpu_custom_call.1} parent=35 // pred_check_branch
          %185 = sbr.rel (%p183) target = $region40
        $region39: #{tpu_custom_call.1} parent=35 // pred_region
          %s186 = sand.u32 %s53, 1
          %s187 = scalar_lea.sflag [#allocation4], %s186
          %s188 = sand.u32 %s53, 1
          %s189 = smul.addr %s188, 4
          %s190 = scalar_lea.vmem [#allocation5], %s189
          %192 = dma.done %s187, 64
        $region40: #{tpu_custom_call.1} parent=35 // pred_fallthru
          _
      $region36: #{tpu_custom_call.1} parent=5 // pred_fallthru
        _
    $region6: #{tpu_custom_call.1} parent=1 // loop_footer
      %s17 = sadd.s32 1, %s13
    $region7: #{tpu_custom_call.1} parent=1 // loop_footer_branch
      %12 = sbr.rel target = $region3
    $region8: #{tpu_custom_call.1} parent=1 // loop_exit
      _
    %193 = vsyncpa [#allocation3], 1
    %s194 = scalar_lea.sflag [#allocation3], 1
    %195 = vsyncpa %s194, 1
    %196 = vsyncpa [#allocation4], 1
    %s197 = scalar_lea.sflag [#allocation4], 1
    %198 = vsyncpa %s197, 1

</llo_original>
